<compile_context>
chip_gen: v5e
topology: v5e:2x2
jax: 0.10.0
libtpu: 0.0.40
codegen_flags: <defaults>
</compile_context>

<pallas_src>
import functools

import jax
import jax.numpy as jnp
import numpy as np
from jax import lax
from jax.experimental import pallas as pl
from jax.experimental.pallas import tpu as pltpu


def _round_up(x, m):
    return (x + m - 1) // m * m


# ------------------------------------------------------------------ kernel ---
def _conv_bn_relu_kernel(x_ref, w_ref, shift_ref, out_ref, *, Mo, Wp):
    """Fused 3x3 / stride-2 conv (implicit im2col) + folded-BN shift + ReLU.

    x_ref:     [1, R, 4*Cin]       bf16  space-to-depth rows of one image
    w_ref:     [4, 4*Cin, Cout_p]  bf16  BN-scale-folded weights (resident)
    shift_ref: [1, Cout_p]         f32   folded conv-bias + BN shift (resident)
    out_ref:   [1, Mo, Cout_p]     f32   (Mo = Ho * Wp; extra column is junk)
    """
    x0 = x_ref[0, pl.ds(0, Mo), :]          # s2d[ho,   wo  ]
    x1 = x_ref[0, pl.ds(1, Mo), :]          # s2d[ho,   wo+1]
    x2 = x_ref[0, pl.ds(Wp, Mo), :]         # s2d[ho+1, wo  ]
    x3 = x_ref[0, pl.ds(Wp + 1, Mo), :]     # s2d[ho+1, wo+1]

    acc = jnp.dot(x0, w_ref[0], preferred_element_type=jnp.float32)
    acc += jnp.dot(x1, w_ref[1], preferred_element_type=jnp.float32)
    acc += jnp.dot(x2, w_ref[2], preferred_element_type=jnp.float32)
    acc += jnp.dot(x3, w_ref[3], preferred_element_type=jnp.float32)

    out_ref[0] = jnp.maximum(acc + shift_ref[...], 0.0)   # shift + ReLU


# ----------------------------------------------------------------- wrapper ---
@jax.jit
def vae32_downblock(x_nchw, conv_w, conv_b, bn_gamma, bn_beta,
                    bn_mean, bn_var, eps=1e-5):
    """x_nchw: [N, Cin, H, W]. Returns [N, Cout, Ho, Wo] float32."""
    x = x_nchw.astype(jnp.float32)          # X.float()
    N, Cin, H, W = x.shape
    Cout = conv_w.shape[0]
    Ho = (H - 3) // 2 + 1
    Wo = (W - 3) // 2 + 1

    # ---- space-to-depth: single fused layout + cast pass (1x HBM traffic) ----
    He, We = H + (H % 2), W + (W % 2)
    if (He, We) != (H, W):                  # pad odd spatial dims (zeros unused)
        x = jnp.pad(x, ((0, 0), (0, 0), (0, He - H), (0, We - W)))
    Hp, Wp = He // 2, We // 2
    C4 = 4 * Cin
    xs = x.reshape(N, Cin, Hp, 2, Wp, 2)
    xs = jnp.transpose(xs, (0, 2, 4, 3, 5, 1))        # [N, Hp, Wp, 2, 2, Cin]
    xs = xs.reshape(N, Hp * Wp, C4)                   # channel = (a*2+b)*Cin + c
    Mo = Ho * Wp                                      # kernel rows per image
    R = _round_up(Hp * Wp + 1, 8)                     # rows the window may touch
    xs = jnp.pad(xs, ((0, 0), (0, R - Hp * Wp), (0, 0))).astype(jnp.bfloat16)

    # ---- fold conv-bias + BatchNorm(eval); build the 4 shifted weight mats ---
    scale = (bn_gamma * lax.rsqrt(bn_var + eps)).astype(jnp.float32)       # [Cout]
    shift = (bn_beta + (conv_b - bn_mean) * scale).astype(jnp.float32)     # [Cout]
    w_hwio = jnp.transpose(conv_w.astype(jnp.float32), (2, 3, 1, 0)) * scale
    # wf[view, a, b, cin, cout]; views = (0,0),(0,+1),(+1,0),(+1,+1) s2d offsets
    wf = jnp.zeros((4, 2, 2, Cin, Cout), jnp.float32)
    wf = wf.at[0].set(w_hwio[0:2, 0:2])        # taps dh in {0,1}, dw in {0,1}
    wf = wf.at[1, :, 0].set(w_hwio[0:2, 2])    # taps dh in {0,1}, dw = 2
    wf = wf.at[2, 0].set(w_hwio[2, 0:2])       # taps dh = 2,      dw in {0,1}
    wf = wf.at[3, 0, 0].set(w_hwio[2, 2])      # tap  dh = 2,      dw = 2

    Cout_p = _round_up(Cout, 128)              # lane-dense output channels
    w_pad = jnp.zeros((4, C4, Cout_p), jnp.bfloat16)
    w_pad = w_pad.at[:, :, :Cout].set(wf.reshape(4, C4, Cout).astype(jnp.bfloat16))
    shift_pad = jnp.zeros((1, Cout_p), jnp.float32).at[0, :Cout].set(shift)

    flops = 2 * N * Mo * C4 * Cout_p * 4
    bytes_accessed = (N * R * C4 * 2 + 4 * C4 * Cout_p * 2
                      + Cout_p * 4 + N * Mo * Cout_p * 4)

    out_flat = pl.pallas_call(
        functools.partial(_conv_bn_relu_kernel, Mo=Mo, Wp=Wp),
        out_shape=jax.ShapeDtypeStruct((N, Mo, Cout_p), jnp.float32),
        grid=(N,),
        in_specs=[
            pl.BlockSpec((1, R, C4), lambda n: (n, 0, 0)),          # per-image
            pl.BlockSpec((4, C4, Cout_p), lambda n: (0, 0, 0)),     # resident
            pl.BlockSpec((1, Cout_p), lambda n: (0, 0)),            # resident
        ],
        out_specs=pl.BlockSpec((1, Mo, Cout_p), lambda n: (n, 0, 0)),
        compiler_params=pltpu.CompilerParams(
            dimension_semantics=("parallel",)),
        cost_estimate=pl.CostEstimate(flops=flops, transcendentals=0,
                                      bytes_accessed=bytes_accessed),
    )(xs, w_pad, shift_pad)

    # ---- single output layout pass: [N, Ho, Wp, Cout_p] -> NCHW --------------
    out = out_flat.reshape(N, Ho, Wp, Cout_p)[:, :, :Wo, :Cout]
    return jnp.transpose(out, (0, 3, 1, 2))


# --------------------------------------------------------------- reference ---
def reference(x_nchw, conv_w, conv_b, bn_gamma, bn_beta, bn_mean, bn_var, eps=1e-5):
    x = x_nchw.astype(jnp.float32)
    y = lax.conv_general_dilated(
        x, conv_w.astype(jnp.float32),
        window_strides=(2, 2), padding="VALID",
        dimension_numbers=("NCHW", "OIHW", "NCHW"))
    y = y + conv_b.reshape(1, -1, 1, 1)
    y = (y - bn_mean.reshape(1, -1, 1, 1)) * lax.rsqrt(bn_var.reshape(1, -1, 1, 1) + eps)
    y = y * bn_gamma.reshape(1, -1, 1, 1) + bn_beta.reshape(1, -1, 1, 1)
    return jnp.maximum(y, 0.0)


# -------------------------------------------------------------------- main ---
if __name__ == "__main__":
    key = jax.random.PRNGKey(0)
    N, Cin, Cout, H, W = 2, 4, 8, 16, 16

    k_x, k_w, k_b, k_g, k_be, k_m, k_v = jax.random.split(key, 7)
    x = jax.random.normal(k_x, (N, Cin, H, W), dtype=jnp.float32)

    fan_in = Cin * 3 * 3
    bound = 1.0 / np.sqrt(fan_in)
    conv_w = jax.random.uniform(k_w, (Cout, Cin, 3, 3), jnp.float32, -bound, bound)
    conv_b = jax.random.uniform(k_b, (Cout,), jnp.float32, -bound, bound)
    bn_gamma = jax.random.uniform(k_g, (Cout,), jnp.float32, 0.8, 1.2)
    bn_beta = 0.1 * jax.random.normal(k_be, (Cout,), jnp.float32)
    bn_mean = 0.1 * jax.random.normal(k_m, (Cout,), jnp.float32)
    bn_var = jax.random.uniform(k_v, (Cout,), jnp.float32, 0.5, 1.5)

    out = vae32_downblock(x, conv_w, conv_b, bn_gamma, bn_beta, bn_mean, bn_var)
    out = jax.block_until_ready(out)
    assert out.shape == (N, Cout, 7, 7)

    ref = reference(x, conv_w, conv_b, bn_gamma, bn_beta, bn_mean, bn_var)
    # bf16 MXU feed (f32 accumulation) vs f32 reference -> relaxed tolerance.
    np.testing.assert_allclose(np.asarray(out), np.asarray(ref),
                               rtol=2e-2, atol=2e-2)

    print("KERNEL_OK")
</pallas_src>

<mosaic_0001>
module attributes {stable_mosaic.version = 11 : i64} {
  func.func @_conv_bn_relu_kernel(%arg0: i32, %arg1: memref<1x72x16xbf16, #tpu.memory_space<vmem>>, %arg2: memref<4x16x128xbf16, #tpu.memory_space<vmem>>, %arg3: memref<1x128xf32, #tpu.memory_space<vmem>>, %arg4: memref<1x56x128xf32, #tpu.memory_space<vmem>>) attributes {dimension_semantics = [#tpu.dimension_semantics<parallel>], iteration_bounds = array<i64: 2>, scalar_prefetch = 0 : i64, scratch_operands = 0 : i64, tpu.core_type = #tpu.core_type<tc>, window_params = [{transform_indices = @transform_0, window_bounds = array<i64: 1, 72, 16>}, {pipeline_mode = #tpu.pipeline_mode<synchronous>, transform_indices = @transform_1, window_bounds = array<i64: 4, 16, 128>}, {pipeline_mode = #tpu.pipeline_mode<synchronous>, transform_indices = @transform_2, window_bounds = array<i64: 1, 128>}, {transform_indices = @transform_3, window_bounds = array<i64: 1, 56, 128>}]} {
    %c0 = arith.constant 0 : index
    %c0_0 = arith.constant 0 : index
    %c0_1 = arith.constant 0 : index
    %0 = vector.load %arg1[%c0, %c0_0, %c0_1] : memref<1x72x16xbf16, #tpu.memory_space<vmem>>, vector<1x56x16xbf16>
    %1 = vector.shape_cast %0 : vector<1x56x16xbf16> to vector<56x16xbf16>
    %c0_2 = arith.constant 0 : index
    %c1 = arith.constant 1 : index
    %c0_3 = arith.constant 0 : index
    %2 = vector.load %arg1[%c0_2, %c1, %c0_3] : memref<1x72x16xbf16, #tpu.memory_space<vmem>>, vector<1x56x16xbf16>
    %3 = vector.shape_cast %2 : vector<1x56x16xbf16> to vector<56x16xbf16>
    %c0_4 = arith.constant 0 : index
    %c8 = arith.constant 8 : index
    %c0_5 = arith.constant 0 : index
    %4 = vector.load %arg1[%c0_4, %c8, %c0_5] : memref<1x72x16xbf16, #tpu.memory_space<vmem>>, vector<1x56x16xbf16>
    %5 = vector.shape_cast %4 : vector<1x56x16xbf16> to vector<56x16xbf16>
    %c0_6 = arith.constant 0 : index
    %c9 = arith.constant 9 : index
    %c0_7 = arith.constant 0 : index
    %6 = vector.load %arg1[%c0_6, %c9, %c0_7] : memref<1x72x16xbf16, #tpu.memory_space<vmem>>, vector<1x56x16xbf16>
    %7 = vector.shape_cast %6 : vector<1x56x16xbf16> to vector<56x16xbf16>
    %c0_8 = arith.constant 0 : index
    %c0_9 = arith.constant 0 : index
    %c0_10 = arith.constant 0 : index
    %8 = vector.load %arg2[%c0_8, %c0_9, %c0_10] : memref<4x16x128xbf16, #tpu.memory_space<vmem>>, vector<1x16x128xbf16>
    %9 = vector.shape_cast %8 : vector<1x16x128xbf16> to vector<16x128xbf16>
    %cst = arith.constant dense<0.000000e+00> : vector<56x128xf32>
    %10 = tpu.matmul %1, %9, %cst {dimension_numbers = #tpu.dot_dimension_numbers<[1], [0], [0], [1], [0, 0, 1, 1], [], []>} : vector<56x16xbf16>, vector<16x128xbf16>, vector<56x128xf32> -> vector<56x128xf32>
    %c1_11 = arith.constant 1 : index
    %c0_12 = arith.constant 0 : index
    %c0_13 = arith.constant 0 : index
    %11 = vector.load %arg2[%c1_11, %c0_12, %c0_13] : memref<4x16x128xbf16, #tpu.memory_space<vmem>>, vector<1x16x128xbf16>
    %12 = vector.shape_cast %11 : vector<1x16x128xbf16> to vector<16x128xbf16>
    %cst_14 = arith.constant dense<0.000000e+00> : vector<56x128xf32>
    %13 = tpu.matmul %3, %12, %cst_14 {dimension_numbers = #tpu.dot_dimension_numbers<[1], [0], [0], [1], [0, 0, 1, 1], [], []>} : vector<56x16xbf16>, vector<16x128xbf16>, vector<56x128xf32> -> vector<56x128xf32>
    %14 = arith.addf %10, %13 : vector<56x128xf32>
    %c2 = arith.constant 2 : index
    %c0_15 = arith.constant 0 : index
    %c0_16 = arith.constant 0 : index
    %15 = vector.load %arg2[%c2, %c0_15, %c0_16] : memref<4x16x128xbf16, #tpu.memory_space<vmem>>, vector<1x16x128xbf16>
    %16 = vector.shape_cast %15 : vector<1x16x128xbf16> to vector<16x128xbf16>
    %cst_17 = arith.constant dense<0.000000e+00> : vector<56x128xf32>
    %17 = tpu.matmul %5, %16, %cst_17 {dimension_numbers = #tpu.dot_dimension_numbers<[1], [0], [0], [1], [0, 0, 1, 1], [], []>} : vector<56x16xbf16>, vector<16x128xbf16>, vector<56x128xf32> -> vector<56x128xf32>
    %18 = arith.addf %14, %17 : vector<56x128xf32>
    %c3 = arith.constant 3 : index
    %c0_18 = arith.constant 0 : index
    %c0_19 = arith.constant 0 : index
    %19 = vector.load %arg2[%c3, %c0_18, %c0_19] : memref<4x16x128xbf16, #tpu.memory_space<vmem>>, vector<1x16x128xbf16>
    %20 = vector.shape_cast %19 : vector<1x16x128xbf16> to vector<16x128xbf16>
    %cst_20 = arith.constant dense<0.000000e+00> : vector<56x128xf32>
    %21 = tpu.matmul %7, %20, %cst_20 {dimension_numbers = #tpu.dot_dimension_numbers<[1], [0], [0], [1], [0, 0, 1, 1], [], []>} : vector<56x16xbf16>, vector<16x128xbf16>, vector<56x128xf32> -> vector<56x128xf32>
    %22 = arith.addf %18, %21 : vector<56x128xf32>
    %c0_21 = arith.constant 0 : index
    %c0_22 = arith.constant 0 : index
    %23 = vector.load %arg3[%c0_21, %c0_22] : memref<1x128xf32, #tpu.memory_space<vmem>>, vector<1x128xf32>
    %24 = vector.broadcast %23 : vector<1x128xf32> to vector<56x128xf32>
    %25 = arith.addf %22, %24 : vector<56x128xf32>
    %cst_23 = arith.constant 0.000000e+00 : f32
    %26 = vector.broadcast %cst_23 : f32 to vector<56x128xf32>
    %27 = arith.maximumf %25, %26 : vector<56x128xf32>
    %c0_24 = arith.constant 0 : index
    %c0_25 = arith.constant 0 : index
    %c0_26 = arith.constant 0 : index
    %28 = vector.load %arg4[%c0_24, %c0_25, %c0_26] : memref<1x56x128xf32, #tpu.memory_space<vmem>>, vector<1x56x128xf32>
    %29 = vector.shape_cast %28 : vector<1x56x128xf32> to vector<56x128xf32>
    %30 = vector.shape_cast %27 : vector<56x128xf32> to vector<1x56x128xf32>
    tpu.vector_store %arg4[%c0_24, %c0_25, %c0_26], %30 {strides = array<i32>} : memref<1x56x128xf32, #tpu.memory_space<vmem>>, vector<1x56x128xf32>,
    return
  }
  func.func @transform_0(%arg0: i32) -> (i32, i32, i32) {
    %c0_i32 = arith.constant 0 : i32
    %c0_i32_0 = arith.constant 0 : i32
    %c0_i32_1 = arith.constant 0 : i32
    return %arg0, %c0_i32, %c0_i32_0 : i32, i32, i32
  }
  func.func @transform_1(%arg0: i32) -> (i32, i32, i32) {
    %c0_i32 = arith.constant 0 : i32
    %c0_i32_0 = arith.constant 0 : i32
    %c0_i32_1 = arith.constant 0 : i32
    %c0_i32_2 = arith.constant 0 : i32
    return %c0_i32, %c0_i32_0, %c0_i32_1 : i32, i32, i32
  }
  func.func @transform_2(%arg0: i32) -> (i32, i32) {
    %c0_i32 = arith.constant 0 : i32
    %c0_i32_0 = arith.constant 0 : i32
    %c0_i32_1 = arith.constant 0 : i32
    return %c0_i32, %c0_i32_0 : i32, i32
  }
  func.func @transform_3(%arg0: i32) -> (i32, i32, i32) {
    %c0_i32 = arith.constant 0 : i32
    %c0_i32_0 = arith.constant 0 : i32
    %c0_i32_1 = arith.constant 0 : i32
    return %arg0, %c0_i32, %c0_i32_0 : i32, i32, i32
  }
}

</mosaic_0001>

<llo_original>
// kernel: vae32_downblock.1
$region0: #{vae32_downblock.1}
  #allocation0 [shape = 'u32[]', space=smem, size = 0x4, offset = 0x4, fixed_abs, tag = 'smem constant byte address 0x4 - core index']
  #allocation1 [shape = 'u32[72,128]{1,0:T(1,128)}', space=vmem, size = 0x9000, scoped, tag = 'internal scratch']
  %s0 = inlined_call_operand.vmem [shape: bf16[2,72,16], index: 0, kind: input, shape index: {}]
  %s1 = inlined_call_operand.vmem [shape: bf16[4,16,128], index: 1, kind: input, shape index: {}]
  %s2 = inlined_call_operand.vmem [shape: f32[1,128], index: 2, kind: input, shape index: {}]
  %s3 = inlined_call_operand.vmem [shape: f32[2,56,128], index: 3, kind: output, shape index: {}]
  %s4 = sld [smem:[#allocation0]]
  $region45: #{vae32_downblock.1} parent=0
    _
  %s6 = ssub.s32 1, %s4
  %s7 = scalar_select 0, %s6, %s4
  loop: start=0, step=1, limit=4
  $region2: #{vae32_downblock.1} parent=0 // loop_pre_header
    _
  $region3: #{vae32_downblock.1} parent=0 // loop_header
    %s9 = sphi 0, %s13
    %p10 = scmp.ge.s32.totalorder %s9, 4
    %s19 = sphi 0, %s21
    %s22 = sphi 0, %s19
    %s23 = sphi 0, %s22
    %s39 = sphi 0, %s23
    %s43 = sphi 0, %s43
    %s45 = sphi 0, %s43
    %s46 = sphi 0, %s45
    %s60 = sphi 0, %s46
    %s64 = sphi 0, %s64
    %s66 = sphi 0, %s64
    %s67 = sphi 0, %s66
    %s81 = sphi 0, %s67
    %s87 = sphi 0, %s89
    %s90 = sphi 0, %s87
    %s91 = sphi 0, %s90
    %s107 = sphi 0, %s91
  $region4: #{vae32_downblock.1} parent=0 // loop_header_branch
    %12 = sbr.rel (%p10) target = $region8
  $region5: #{vae32_downblock.1} parent=0 // loop_body
    %s14 = ssub.s32 %s9, 1
    %s15 = ssub.s32 %s9, 2
    %s16 = sadd.s32 %s9, 1
    %s17 = ssub.s32 %s9, %s16
    %p18 = scmp.eq.s32.totalorder %s17, 0
    %s20 = sadd.s32 %s19, 1
    %s21 = scalar_select %p18, %s19, %s20
    %p24 = pneg %p18
    %p25 = scmp.eq.s32.totalorder %s9, 1
    %p26 = por %p24, %p25
    %p27 = scmp.ne.s32.totalorder %s19, %s22
    %p28 = scmp.eq.s32.totalorder %s9, 0
    %p29 = por %p27, %p28
    %p30 = scmp.ne.s32.totalorder %s19, %s22
    %p31 = scmp.eq.s32.totalorder %s14, 1
    %p32 = por %p30, %p31
    %p33 = scmp.ne.s32.totalorder %s22, %s23
    %p34 = scmp.eq.s32.totalorder %s14, 0
    %p35 = por %p33, %p34
    %p36 = scmp.ne.s32.totalorder %s22, %s23
    %p37 = scmp.eq.s32.totalorder %s15, 1
    %p38 = por %p36, %p37
    %p40 = scmp.ne.s32.totalorder %s23, %s39
    %p41 = scmp.eq.s32.totalorder %s15, 0
    %p42 = por %p40, %p41
    %s44 = sadd.s32 %s43, 1
    %p47 = scmp.eq.s32.totalorder %s9, 1
    %p48 = scmp.ne.s32.totalorder %s43, %s45
    %p49 = scmp.eq.s32.totalorder %s9, 0
    %p50 = por %p48, %p49
    %p51 = scmp.ne.s32.totalorder %s43, %s45
    %p52 = scmp.eq.s32.totalorder %s14, 1
    %p53 = por %p51, %p52
    %p54 = scmp.ne.s32.totalorder %s45, %s46
    %p55 = scmp.eq.s32.totalorder %s14, 0
    %p56 = por %p54, %p55
    %p57 = scmp.ne.s32.totalorder %s45, %s46
    %p58 = scmp.eq.s32.totalorder %s15, 1
    %p59 = por %p57, %p58
    %p61 = scmp.ne.s32.totalorder %s46, %s60
    %p62 = scmp.eq.s32.totalorder %s15, 0
    %p63 = por %p61, %p62
    %s65 = sadd.s32 %s64, 1
    %p68 = scmp.eq.s32.totalorder %s9, 1
    %p69 = scmp.ne.s32.totalorder %s64, %s66
    %p70 = scmp.eq.s32.totalorder %s9, 0
    %p71 = por %p69, %p70
    %p72 = scmp.ne.s32.totalorder %s64, %s66
    %p73 = scmp.eq.s32.totalorder %s14, 1
    %p74 = por %p72, %p73
    %p75 = scmp.ne.s32.totalorder %s66, %s67
    %p76 = scmp.eq.s32.totalorder %s14, 0
    %p77 = por %p75, %p76
    %p78 = scmp.ne.s32.totalorder %s66, %s67
    %p79 = scmp.eq.s32.totalorder %s15, 1
    %p80 = por %p78, %p79
    %p82 = scmp.ne.s32.totalorder %s67, %s81
    %p83 = scmp.eq.s32.totalorder %s15, 0
    %p84 = por %p82, %p83
    %s85 = ssub.s32 %s9, %s16
    %p86 = scmp.eq.s32.totalorder %s85, 0
    %s88 = sadd.s32 %s87, 1
    %s89 = scalar_select %p86, %s87, %s88
    %p92 = pneg %p86
    %p93 = scmp.eq.s32.totalorder %s9, 1
    %p94 = por %p92, %p93
    %p95 = scmp.ne.s32.totalorder %s87, %s90
    %p96 = scmp.eq.s32.totalorder %s9, 0
    %p97 = por %p95, %p96
    %p98 = scmp.ne.s32.totalorder %s87, %s90
    %p99 = scmp.eq.s32.totalorder %s14, 1
    %p100 = por %p98, %p99
    %p101 = scmp.ne.s32.totalorder %s90, %s91
    %p102 = scmp.eq.s32.totalorder %s14, 0
    %p103 = por %p101, %p102
    %p104 = scmp.ne.s32.totalorder %s90, %s91
    %p105 = scmp.eq.s32.totalorder %s15, 1
    %p106 = por %p104, %p105
    %p108 = scmp.ne.s32.totalorder %s91, %s107
    %p109 = scmp.eq.s32.totalorder %s15, 0
    %p110 = por %p108, %p109
    %p111 = scmp.le.s32.totalorder 1, %s9
    %p112 = scmp.lt.s32.totalorder %s9, 3
    %p113 = pnand %p111, %p112
    %p114 = pneg %p113
    // Predicated region
    $region9: #{vae32_downblock.1} parent=5 // pred_check
      _
    $region10: #{vae32_downblock.1} parent=5 // pred_check_branch
      %116 = sbr.rel (%p113) target = $region12
    $region11: #{vae32_downblock.1} parent=5 // pred_region
      %s117 = ssub.s32 %s9, 1
      // Predicated region
      $region13: #{vae32_downblock.1} parent=11 // pred_check
        %p118 = pneg %p56
      $region14: #{vae32_downblock.1} parent=11 // pred_check_branch
        %120 = sbr.rel (%p118) target = $region16
      $region15: #{vae32_downblock.1} parent=11 // pred_region
        _
      $region16: #{vae32_downblock.1} parent=11 // pred_fallthru
        _
      // Predicated region
      $region17: #{vae32_downblock.1} parent=11 // pred_check
        %p121 = pneg %p77
      $region18: #{vae32_downblock.1} parent=11 // pred_check_branch
        %123 = sbr.rel (%p121) target = $region20
      $region19: #{vae32_downblock.1} parent=11 // pred_region
        _
      $region20: #{vae32_downblock.1} parent=11 // pred_fallthru
        _
    $region12: #{vae32_downblock.1} parent=5 // pred_fallthru
      _
    %p124 = scmp.lt.s32.totalorder %s9, 2
    // Predicated region
    $region21: #{vae32_downblock.1} parent=5 // pred_check
      %p125 = pneg %p124
    $region22: #{vae32_downblock.1} parent=5 // pred_check_branch
      %127 = sbr.rel (%p125) target = $region24
    $region23: #{vae32_downblock.1} parent=5 // pred_region
      // Predicated region
      $region25: #{vae32_downblock.1} parent=23 // pred_check
        %p128 = pneg %p29
      $region26: #{vae32_downblock.1} parent=23 // pred_check_branch
        %130 = sbr.rel (%p128) target = $region28
      $region27: #{vae32_downblock.1} parent=23 // pred_region
        %p131 = scmp.lt.s32.totalorder %s9, 1
        %s132 = scalar_select %p131, %s9, 1
        %s133 = smul.addr %s132, 9
        %s134 = smul.addr %s133, 4
        %s135 = scalar_lea.vmem %s0, %s134
      $region28: #{vae32_downblock.1} parent=23 // pred_fallthru
        _
    $region24: #{vae32_downblock.1} parent=5 // pred_fallthru
      _
    %p136 = scmp.le.s32.totalorder 1, %s9
    %p137 = scmp.lt.s32.totalorder %s9, 3
    %p138 = pnand %p136, %p137
    %p139 = pneg %p138
    // Predicated region
    $region29: #{vae32_downblock.1} parent=5 // pred_check
      _
    $region30: #{vae32_downblock.1} parent=5 // pred_check_branch
      %141 = sbr.rel (%p138) target = $region32
    $region31: #{vae32_downblock.1} parent=5 // pred_region
      %s142 = ssub.s32 %s9, 1
      %p143 = scmp.lt.s32.totalorder %s14, 1
      %s144 = scalar_select %p143, %s14, 1
      %s145 = smul.addr %s144, 9
      %s146 = smul.addr %s145, 4
      %s147 = scalar_lea.vmem %s0, %s146
      %p148 = pneg %p35
      %p149 = pneg %p32
      %p150 = pneg %p56
      %p151 = pneg %p53
      %p152 = pneg %p77
      %p153 = pneg %p74
      %p154 = pneg %p103
      %p155 = pneg %p100
      %p156 = scmp.lt.s32.totalorder %s14, 1
      %s157 = scalar_select %p156, %s14, 1
      %s158 = smul.addr %s157, 7
      %s159 = smul.addr %s158, 8
      %s160 = scalar_lea.vmem %s3, %s159
      %p161 = scmp.lt.s32.totalorder %s14, 1
      %s162 = scalar_select %p161, %s14, 1
      %s163 = smul.addr %s162, 9
      %s164 = smul.addr %s163, 4
      %s165 = scalar_lea.vmem %s0, %s164
      %p166 = scmp.lt.s32.totalorder %s14, 1
      %s167 = scalar_select %p166, %s14, 1
      %s168 = smul.addr %s167, 7
      %s169 = smul.addr %s168, 8
      %s170 = scalar_lea.vmem %s3, %s169
      %v172 = vld [vmem:[%s165] sm:$0xf]
      %v173 = vld [vmem:[%s165 + $0x4] sm:$0xf]
      %v174 = vld [vmem:[%s165 + $0x8] sm:$0xf]
      %v175 = vld [vmem:[%s165 + $0xc] sm:$0xf]
      %v176 = vld [vmem:[%s165 + $0x10] sm:$0xf]
      %v177 = vld [vmem:[%s165 + $0x14] sm:$0xf]
      %v178 = vld [vmem:[%s165 + $0x18] sm:$0xf]
      %v179 = vld [vmem:[%s165 + $0x1c] sm:$0x1]
      %v180 = vld [vmem:[%s165 + $0x1c] sm:$0xf]
      %v181 = vld [vmem:[%s165 + $0x20] sm:$0x1]
      %v182 = vld [vmem:[%s1] sm:$0xf]
      %v183 = vld [vmem:[%s1 + $0x4] sm:$0xf]
      %s184 = scalar_lea.vmem %s1, 8
      %v185 = vld [vmem:[%s184] sm:$0xf]
      %v186 = vld [vmem:[%s184 + $0x4] sm:$0xf]
      %v195 = vunpack.c.l.b16 %v172
      %v196 = vunpack.c.l.b16 %v173
      %v197 = vunpack.c.l.b16 %v174
      %v198 = vunpack.c.l.b16 %v175
      %v199 = vunpack.c.l.b16 %v176
      %v200 = vunpack.c.l.b16 %v177
      %v201 = vunpack.c.l.b16 %v178
      %v202 = vunpack.c.l.b16 %v179
      %v203 = vpack.c.b16 %v196, %v195
      %v204 = vpack.c.b16 %v198, %v197
      %v205 = vpack.c.b16 %v200, %v199
      %v206 = vpack.c.b16 %v202, %v201
      %vm207 = vsmask.f32 7424
      %v209 = vshrl.u32 %v203, 16
      %v211 = vshll.u32 %v203, 16
      %v213 = vrot.slane %v211, 1
      %v214 = vor.u32 %v209, %v213
      %v216 = vshll.u32 %v204, 16
      %v218 = vrot.slane %v216, 1
      %v219 = vsel %vm207, %v214, %v218
      %v220 = vshrl.u32 %v204, 16
      %v222 = vor.u32 %v220, %v218
      %v224 = vshll.u32 %v205, 16
      %v226 = vrot.slane %v224, 1
      %v227 = vsel %vm207, %v222, %v226
      %v228 = vshrl.u32 %v205, 16
      %v230 = vor.u32 %v228, %v226
      %v232 = vshll.u32 %v206, 16
      %v234 = vrot.slane %v232, 1
      %v235 = vsel %vm207, %v230, %v234
      %v236 = vshrl.u32 %v206, 16
      %v238 = vor.u32 %v236, %v234
      %v241 = vunpack.c.l.b16 %v185
      %v242 = vunpack.c.l.b16 %v186
      %v243 = vpack.c.b16 %v242, %v241
      %vm245 = vcmask 130048
      %v247 = vsel %vm245, %v219, 0
      %v250 = vsel %vm245, %v227, 0
      %v253 = vsel %vm245, %v235, 0
      %v256 = vsel %vm245, %v238, 0
      %258 = vmatpush.bf16.msra.mxu0 0
      %259 = vmatpush.bf16.msra.mxu0 0
      %260 = vmatpush.bf16.msra.mxu0 0
      %261 = vmatpush.bf16.msra.mxu0 0
      %262 = vmatpush.bf16.msra.mxu0 0
      %263 = vmatpush.bf16.msra.mxu0 0
      %264 = vmatpush.bf16.msra.mxu0 0
      %265 = vmatpush.bf16.msra.mxu0 %v243
      %266 = vmatmul.bf16.gmra.mxu0 %v247
      %v267 = vpop.f32.mrf.mxu0
      %v268 = vadd.f32 0.0, %v267
      %v269 = vpop.f32.mrf.mxu0
      %v270 = vadd.f32 0.0, %v269
      %271 = vmatmul.bf16.gmra.mxu0 %v250
      %v272 = vpop.f32.mrf.mxu0
      %v273 = vadd.f32 0.0, %v272
      %v274 = vpop.f32.mrf.mxu0
      %v275 = vadd.f32 0.0, %v274
      %276 = vmatmul.bf16.gmra.mxu0 %v253
      %v277 = vpop.f32.mrf.mxu0
      %v278 = vadd.f32 0.0, %v277
      %v279 = vpop.f32.mrf.mxu0
      %v280 = vadd.f32 0.0, %v279
      %281 = vmatmul.bf16.gmra.mxu0 %v256
      %v282 = vpop.f32.mrf.mxu0
      %v283 = vadd.f32 0.0, %v282
      %v284 = vpop.f32.mrf.mxu0
      %285 = vdwg.mxu0
      %v286 = vpack.c.b16 %v201, %v201
      %v289 = vunpack.c.l.b16 %v182
      %v290 = vunpack.c.l.b16 %v183
      %v291 = vpack.c.b16 %v290, %v289
      %v293 = vsel %vm245, %v203, 0
      %v295 = vsel %vm245, %v204, 0
      %v297 = vsel %vm245, %v205, 0
      %v300 = vsel %vm245, %v286, 0
      %302 = vmatpush.bf16.msra.mxu0 0
      %303 = vmatpush.bf16.msra.mxu0 0
      %304 = vmatpush.bf16.msra.mxu0 0
      %305 = vmatpush.bf16.msra.mxu0 0
      %306 = vmatpush.bf16.msra.mxu0 0
      %307 = vmatpush.bf16.msra.mxu0 0
      %308 = vmatpush.bf16.msra.mxu0 0
      %309 = vmatpush.bf16.msra.mxu0 %v291
      %310 = vmatmul.bf16.gmra.mxu0 %v293
      %v311 = vpop.f32.mrf.mxu0
      %v312 = vadd.f32 %v268, %v311
      %v313 = vpop.f32.mrf.mxu0
      %v314 = vadd.f32 %v270, %v313
      %315 = vmatmul.bf16.gmra.mxu0 %v295
      %v316 = vpop.f32.mrf.mxu0
      %v317 = vadd.f32 %v273, %v316
      %v318 = vpop.f32.mrf.mxu0
      %v319 = vadd.f32 %v275, %v318
      %320 = vmatmul.bf16.gmra.mxu0 %v297
      %v321 = vpop.f32.mrf.mxu0
      %v322 = vadd.f32 %v278, %v321
      %v323 = vpop.f32.mrf.mxu0
      %v324 = vadd.f32 %v280, %v323
      %325 = vmatmul.bf16.gmra.mxu0 %v300
      %v326 = vpop.f32.mrf.mxu0
      %v327 = vadd.f32 %v283, %v326
      %v328 = vpop.f32.mrf.mxu0
      %329 = vdwg.mxu0
      %s330 = scalar_lea.vmem %s1, 16
      %v331 = vld [vmem:[%s330] sm:$0xf]
      %v332 = vld [vmem:[%s330 + $0x4] sm:$0xf]
      %v334 = vunpack.c.l.b16 %v180
      %v335 = vpack.c.b16 %v197, %v196
      %v336 = vpack.c.b16 %v199, %v198
      %v337 = vpack.c.b16 %v201, %v200
      %v338 = vpack.c.b16 %v334, %v334
      %v341 = vunpack.c.l.b16 %v331
      %v342 = vunpack.c.l.b16 %v332
      %v343 = vpack.c.b16 %v342, %v341
      %v346 = vsel %vm245, %v335, 0
      %v349 = vsel %vm245, %v336, 0
      %v352 = vsel %vm245, %v337, 0
      %v355 = vsel %vm245, %v338, 0
      %357 = vmatpush.bf16.msra.mxu0 0
      %358 = vmatpush.bf16.msra.mxu0 0
      %359 = vmatpush.bf16.msra.mxu0 0
      %360 = vmatpush.bf16.msra.mxu0 0
      %361 = vmatpush.bf16.msra.mxu0 0
      %362 = vmatpush.bf16.msra.mxu0 0
      %363 = vmatpush.bf16.msra.mxu0 0
      %364 = vmatpush.bf16.msra.mxu0 %v343
      %365 = vmatmul.bf16.gmra.mxu0 %v346
      %v366 = vpop.f32.mrf.mxu0
      %v367 = vadd.f32 0.0, %v366
      %v368 = vpop.f32.mrf.mxu0
      %v369 = vadd.f32 0.0, %v368
      %370 = vmatmul.bf16.gmra.mxu0 %v349
      %v371 = vpop.f32.mrf.mxu0
      %v372 = vadd.f32 0.0, %v371
      %v373 = vpop.f32.mrf.mxu0
      %v374 = vadd.f32 0.0, %v373
      %375 = vmatmul.bf16.gmra.mxu0 %v352
      %v376 = vpop.f32.mrf.mxu0
      %v377 = vadd.f32 0.0, %v376
      %v378 = vpop.f32.mrf.mxu0
      %v379 = vadd.f32 0.0, %v378
      %380 = vmatmul.bf16.gmra.mxu0 %v355
      %v381 = vpop.f32.mrf.mxu0
      %v382 = vadd.f32 0.0, %v381
      %v383 = vpop.f32.mrf.mxu0
      %384 = vdwg.mxu0
      %v385 = vadd.f32 %v312, %v367
      %v386 = vadd.f32 %v314, %v369
      %v387 = vadd.f32 %v317, %v372
      %v388 = vadd.f32 %v319, %v374
      %v389 = vadd.f32 %v322, %v377
      %v390 = vadd.f32 %v324, %v379
      %v391 = vadd.f32 %v327, %v382
      %s392 = scalar_lea.vmem %s1, 24
      %v393 = vld [vmem:[%s392] sm:$0xf]
      %v394 = vld [vmem:[%s392 + $0x4] sm:$0xf]
      %v396 = vunpack.c.l.b16 %v181
      %v397 = vpack.c.b16 %v396, %v334
      %v398 = vshrl.u32 %v335, 16
      %v400 = vshll.u32 %v335, 16
      %v402 = vrot.slane %v400, 1
      %v403 = vor.u32 %v398, %v402
      %v404 = vshll.u32 %v336, 16
      %v406 = vrot.slane %v404, 1
      %v407 = vsel %vm207, %v403, %v406
      %v408 = vshrl.u32 %v336, 16
      %v410 = vor.u32 %v408, %v406
      %v411 = vshll.u32 %v337, 16
      %v413 = vrot.slane %v411, 1
      %v414 = vsel %vm207, %v410, %v413
      %v415 = vshrl.u32 %v337, 16
      %v417 = vor.u32 %v415, %v413
      %v419 = vshll.u32 %v397, 16
      %v421 = vrot.slane %v419, 1
      %v422 = vsel %vm207, %v417, %v421
      %v423 = vshrl.u32 %v397, 16
      %v425 = vor.u32 %v423, %v421
      %v428 = vunpack.c.l.b16 %v393
      %v429 = vunpack.c.l.b16 %v394
      %v430 = vpack.c.b16 %v429, %v428
      %v433 = vsel %vm245, %v407, 0
      %v436 = vsel %vm245, %v414, 0
      %v439 = vsel %vm245, %v422, 0
      %v442 = vsel %vm245, %v425, 0
      %444 = vmatpush.bf16.msra.mxu0 0
      %445 = vmatpush.bf16.msra.mxu0 0
      %446 = vmatpush.bf16.msra.mxu0 0
      %447 = vmatpush.bf16.msra.mxu0 0
      %448 = vmatpush.bf16.msra.mxu0 0
      %449 = vmatpush.bf16.msra.mxu0 0
      %450 = vmatpush.bf16.msra.mxu0 0
      %451 = vmatpush.bf16.msra.mxu0 %v430
      %452 = vmatmul.bf16.gmra.mxu0 %v433
      %v453 = vpop.f32.mrf.mxu0
      %v454 = vadd.f32 0.0, %v453
      %v455 = vpop.f32.mrf.mxu0
      %v456 = vadd.f32 0.0, %v455
      %457 = vmatmul.bf16.gmra.mxu0 %v436
      %v458 = vpop.f32.mrf.mxu0
      %v459 = vadd.f32 0.0, %v458
      %v460 = vpop.f32.mrf.mxu0
      %v461 = vadd.f32 0.0, %v460
      %462 = vmatmul.bf16.gmra.mxu0 %v439
      %v463 = vpop.f32.mrf.mxu0
      %v464 = vadd.f32 0.0, %v463
      %v465 = vpop.f32.mrf.mxu0
      %v466 = vadd.f32 0.0, %v465
      %467 = vmatmul.bf16.gmra.mxu0 %v442
      %v468 = vpop.f32.mrf.mxu0
      %v469 = vadd.f32 0.0, %v468
      %v470 = vpop.f32.mrf.mxu0
      %471 = vdwg.mxu0
      %v472 = vadd.f32 %v385, %v454
      %v473 = vadd.f32 %v386, %v456
      %v474 = vadd.f32 %v387, %v459
      %v475 = vadd.f32 %v388, %v461
      %v476 = vadd.f32 %v389, %v464
      %v477 = vadd.f32 %v390, %v466
      %v478 = vadd.f32 %v391, %v469
      %v479 = vld [vmem:[%s2] sm:$0x1]
      %v481 = vperm.slane %v479, 0
      %v483 = vadd.f32 %v472, %v481
      %v484 = vadd.f32 %v473, %v481
      %v485 = vadd.f32 %v474, %v481
      %v486 = vadd.f32 %v475, %v481
      %v487 = vadd.f32 %v476, %v481
      %v488 = vadd.f32 %v477, %v481
      %v489 = vadd.f32 %v478, %v481
      %v490 = vmax.f32 %v483, 0.0
      %v491 = vmax.f32 %v484, 0.0
      %v492 = vmax.f32 %v485, 0.0
      %v493 = vmax.f32 %v486, 0.0
      %v494 = vmax.f32 %v487, 0.0
      %v495 = vmax.f32 %v488, 0.0
      %v496 = vmax.f32 %v489, 0.0
      %497 = vst [vmem:[%s170] sm:$0xff] %v490
      %498 = vst [vmem:[%s170 + $0x8] sm:$0xff] %v491
      %499 = vst [vmem:[%s170 + $0x10] sm:$0xff] %v492
      %500 = vst [vmem:[%s170 + $0x18] sm:$0xff] %v493
      %501 = vst [vmem:[%s170 + $0x20] sm:$0xff] %v494
      %502 = vst [vmem:[%s170 + $0x28] sm:$0xff] %v495
      %503 = vst [vmem:[%s170 + $0x30] sm:$0xff] %v496
      %p504 = scmp.lt.s32.totalorder %s14, 1
      %s505 = scalar_select %p504, %s14, 1
      %s506 = smul.addr %s505, 7
      %s507 = smul.addr %s506, 8
      %s508 = scalar_lea.vmem %s3, %s507
      // Predicated region
      $region33: #{vae32_downblock.1} parent=31 // pred_check
        %p509 = pneg %p100
      $region34: #{vae32_downblock.1} parent=31 // pred_check_branch
        %511 = sbr.rel (%p509) target = $region36
      $region35: #{vae32_downblock.1} parent=31 // pred_region
        _
      $region36: #{vae32_downblock.1} parent=31 // pred_fallthru
        _
    $region32: #{vae32_downblock.1} parent=5 // pred_fallthru
      _
    %p512 = scmp.le.s32.totalorder 2, %s9
    // Predicated region
    $region37: #{vae32_downblock.1} parent=5 // pred_check
      %p513 = pneg %p512
    $region38: #{vae32_downblock.1} parent=5 // pred_check_branch
      %515 = sbr.rel (%p513) target = $region40
    $region39: #{vae32_downblock.1} parent=5 // pred_region
      %s516 = ssub.s32 %s9, 2
      // Predicated region
      $region41: #{vae32_downblock.1} parent=39 // pred_check
        %p517 = pneg %p106
      $region42: #{vae32_downblock.1} parent=39 // pred_check_branch
        %519 = sbr.rel (%p517) target = $region44
      $region43: #{vae32_downblock.1} parent=39 // pred_region
        %p520 = scmp.lt.s32.totalorder %s15, 1
        %s521 = scalar_select %p520, %s15, 1
        %s522 = smul.addr %s521, 7
        %s523 = smul.addr %s522, 8
        %s524 = scalar_lea.vmem %s3, %s523
      $region44: #{vae32_downblock.1} parent=39 // pred_fallthru
        _
    $region40: #{vae32_downblock.1} parent=5 // pred_fallthru
      _
  $region6: #{vae32_downblock.1} parent=0 // loop_footer
    %s13 = sadd.s32 1, %s9
  $region7: #{vae32_downblock.1} parent=0 // loop_footer_branch
    %8 = sbr.rel target = $region3
  $region8: #{vae32_downblock.1} parent=0 // loop_exit
    _

</llo_original>
